<compile_context>
chip_gen: v7x
topology: tpu7x:2x2x1
jax: 0.10.0
libtpu: 0.0.40
codegen_flags: <defaults>
</compile_context>

<pallas_src>
import functools

import jax
import jax.numpy as jnp
import numpy as np
from jax import lax
from jax.experimental import pallas as pl
from jax.experimental.pallas import tpu as pltpu


_LANE = 128
_SUBLANE_ALIGN = {4: 8, 2: 16, 1: 32}  # itemsize -> sublane packing multiple


def _round_up(x, m):
    return (x + m - 1) // m * m


def _vmem_capacity_bytes():
    """Per-core VMEM capacity (64 MiB on v7x, 128 MiB on v5e/v6e)."""
    try:
        info = pltpu.get_tpu_info()
        cap = getattr(info, "vmem_capacity_bytes", None)
        if cap:
            return int(cap)
    except Exception:
        pass
    return 64 * 1024 * 1024  # conservative fallback (v7x per-TC)


def _bf16_valu_supported():
    """True on chips whose VPU natively handles bf16 (v6e / v7x)."""
    try:
        kind = jax.devices()[0].device_kind.lower()
    except Exception:
        return False
    return ("v6" in kind) or ("v7" in kind) or ("7x" in kind)


def _layer_norm_kernel(x_ref, w_ref, b_ref, o_ref, *, eps, subtract_mean, inv_f):
    # x_ref: (block_n, F) tile. F is the full flattened feature dim (may be a
    # non-multiple of 128; Mosaic masks the padded physical lanes inside the
    # cross-lane reductions).  w_ref / b_ref: (1, F) rows in the epilogue
    # dtype (f32, or bf16 on bf16-VPU chips for bf16 inputs).
    x = x_ref[...].astype(jnp.float32)

    # mean over all non-sample dims (flattened feature axis); sum * (1/F) so
    # the divide lowers to a VALU multiply, cross-lane sum stays on the XLU.
    mu = jnp.sum(x, axis=-1, keepdims=True) * inv_f
    centered = x - mu                           # computed once, reused below
    # biased variance (correction=0), as in torch.var(tensor, correction=0)
    var = jnp.sum(centered * centered, axis=-1, keepdims=True) * inv_f
    inv_std = lax.rsqrt(var + eps)              # EUP slot

    ep_dtype = w_ref.dtype
    base = centered if subtract_mean else x
    out = base.astype(ep_dtype) * inv_std.astype(ep_dtype)
    out = out * w_ref[...] + b_ref[...]
    o_ref[...] = out.astype(o_ref.dtype)


def _default_block_n(n_rows, f_lanes, itemsize, vmem_cap,
                     target_tile_bytes=2 * 1024 * 1024,
                     min_tile_bytes=1 * 1024 * 1024,
                     min_steps=8):
    """Row tile that (a) is ~1-2 MiB per pipelined buffer (enough for the HBM
    roofline), (b) keeps >= `min_steps` grid steps when the data allows it
    (double-buffer overlap per TensorCore + 2-TC split on v7x) without ever
    shrinking a tile below ~1 MiB, and (c) fits per-chip VMEM counting the
    in-kernel f32 temporaries."""
    align = _SUBLANE_ALIGN.get(itemsize, 8)
    row_tile_bytes = f_lanes * itemsize

    blk = max(align, target_tile_bytes // row_tile_bytes)
    blk = min(blk, 4096)

    # >= min_steps grid steps, but never below ~1 MiB per tile.
    steps_cap = _round_up(pl.cdiv(n_rows, min_steps), align)
    min_tile_rows = max(align, min_tile_bytes // row_tile_bytes)
    blk = min(blk, max(steps_cap, min_tile_rows))

    # VMEM clamp: double-buffered in+out tiles (4*itemsize bytes/elem) plus
    # ~3 live f32 temporaries (x_f32, centered, out) and headroom (+16 B/elem).
    bytes_per_row = f_lanes * (4 * itemsize + 16)
    max_rows = max(align, (vmem_cap // 2) // bytes_per_row)
    blk = min(blk, max_rows)

    if blk >= n_rows:
        return int(n_rows)        # single block covering the full sample dim
    blk = max(align, (blk // align) * align)
    return int(blk)


def layer_norm_pallas(x, weight=None, bias=None, *, eps=1e-5, mean=True,
                      block_n=None, low_precision_epilogue=None):
    """Pallas equivalent of `_LayerNorm.forward` for an (N, ...) input."""
    if x.ndim < 2:
        raise ValueError("expected input with at least 2 dims (samples, ...)")
    orig_shape = x.shape
    n_rows = int(orig_shape[0])
    feat_shape = tuple(int(d) for d in orig_shape[1:])
    f_valid = 1
    for d in feat_shape:
        f_valid *= d
    f_lanes = max(_LANE, _round_up(f_valid, _LANE))   # physical lane width (sizing only)

    itemsize = jnp.dtype(x.dtype).itemsize
    align = _SUBLANE_ALIGN.get(itemsize, 8)
    vmem_cap = _vmem_capacity_bytes()

    # Guard: the whole flattened feature row (+ f32 temporaries) must fit in
    # VMEM for even the smallest row tile.
    # TODO(synk): add an F-tiled reduction grid axis (running-sum accumulator
    # with pl.when init/finalize, axis marked "arbitrary") for very wide rows.
    if align * f_lanes * (4 * itemsize + 16) > vmem_cap // 2:
        raise ValueError(
            f"flattened feature dim F={f_valid} is too wide for the "
            f"single-tile row layout on this chip (VMEM {vmem_cap >> 20} MiB)")

    # Epilogue dtype: bf16 on bf16-VPU chips (v6e/v7x) for bf16 inputs
    # (there the bf16 path is VALU-bound, not HBM-bound); f32 otherwise.
    if low_precision_epilogue is None:
        use_bf16_ep = (x.dtype == jnp.bfloat16) and _bf16_valu_supported()
    else:
        use_bf16_ep = bool(low_precision_epilogue) and (x.dtype == jnp.bfloat16)
    ep_dtype = jnp.bfloat16 if use_bf16_ep else jnp.float32

    in_features = feat_shape[-1]
    # elementwise_affine=False / bias=False -> identity scale / zero shift
    if weight is None:
        weight = jnp.ones((in_features,), dtype=ep_dtype)
    if bias is None:
        bias = jnp.zeros((in_features,), dtype=ep_dtype)

    # Broadcast (in_features,) params over the remaining feature dims and
    # flatten (tiny arrays; negligible host-side cost).
    w_full = jnp.broadcast_to(weight.astype(ep_dtype), feat_shape).reshape(1, f_valid)
    b_full = jnp.broadcast_to(bias.astype(ep_dtype), feat_shape).reshape(1, f_valid)

    # Flatten x to (N, F). NO pad / slice HBM round trips: the block's last
    # dim equals the full array dim, which is always a legal block shape.
    x2 = x.reshape(n_rows, f_valid)

    if block_n is None:
        block_n = _default_block_n(n_rows, f_lanes, itemsize, vmem_cap)
    else:
        block_n = max(align, _round_up(int(block_n), align))
        if block_n >= n_rows:
            block_n = n_rows

    grid = (pl.cdiv(n_rows, block_n),)
    kernel = functools.partial(
        _layer_norm_kernel,
        eps=float(eps),
        subtract_mean=bool(mean),
        inv_f=float(1.0 / f_valid),
    )

    # Explicit VMEM limit: double-buffered in/out tiles + f32 temporaries +
    # params + headroom, floored at the 32 MiB scoped default and clamped to
    # the per-chip capacity (64 MiB per TC on v7x).
    tile_bytes = block_n * f_lanes * itemsize
    temp_bytes = 3 * block_n * f_lanes * 4
    param_bytes = 4 * f_lanes * jnp.dtype(ep_dtype).itemsize
    needed = 4 * tile_bytes + temp_bytes + param_bytes + (2 << 20)
    vmem_limit = int(min(max(32 << 20, needed), vmem_cap))

    out2 = pl.pallas_call(
        kernel,
        out_shape=jax.ShapeDtypeStruct((n_rows, f_valid), x.dtype),
        grid=grid,
        in_specs=[
            pl.BlockSpec((block_n, f_valid), lambda i: (i, 0)),  # x row tile
            pl.BlockSpec((1, f_valid), lambda i: (0, 0)),        # weight
            pl.BlockSpec((1, f_valid), lambda i: (0, 0)),        # bias
        ],
        out_specs=pl.BlockSpec((block_n, f_valid), lambda i: (i, 0)),
        compiler_params=pltpu.CompilerParams(
            dimension_semantics=("parallel",),
            vmem_limit_bytes=vmem_limit,
        ),
    )(x2, w_full, b_full)

    return out2.reshape(orig_shape)


def layer_norm_ref(x, weight=None, bias=None, *, eps=1e-5, mean=True):
    """Pure-JAX reference mirroring the PyTorch `_layer_norm` semantics."""
    x32 = x.astype(jnp.float32)
    dims = tuple(range(1, x.ndim))
    mu = jnp.mean(x32, axis=dims, keepdims=True)
    var = jnp.var(x32, axis=dims, ddof=0, keepdims=True)
    out = (x32 - mu) if mean else x32
    out = out / jnp.sqrt(var + eps)
    if weight is not None:
        out = out * weight.astype(jnp.float32)
    if bias is not None:
        out = out + bias.astype(jnp.float32)
    return out.astype(x.dtype)


if __name__ == "__main__":
    key = jax.random.PRNGKey(0)
    eps = 1e-5

    # --- case 1: (samples, in_features) = (64, 128), f32, mean=True ---------
    in_features = 128
    k0, k1, k2, k3 = jax.random.split(key, 4)
    x = jax.random.normal(k0, (64, in_features), dtype=jnp.float32)
    weight = jnp.ones((in_features,), dtype=jnp.float32)   # reset_parameters()
    bias = jnp.zeros((in_features,), dtype=jnp.float32)

    out = jax.block_until_ready(layer_norm_pallas(x, weight, bias, eps=eps, mean=True))
    ref = layer_norm_ref(x, weight, bias, eps=eps, mean=True)
    np.testing.assert_allclose(np.asarray(out), np.asarray(ref), rtol=1e-5, atol=1e-5)

    # --- case 2: mean=False path --------------------------------------------
    out = jax.block_until_ready(layer_norm_pallas(x, weight, bias, eps=eps, mean=False))
    ref = layer_norm_ref(x, weight, bias, eps=eps, mean=False)
    np.testing.assert_allclose(np.asarray(out), np.asarray(ref), rtol=1e-5, atol=1e-5)

    # --- case 3: non-trivial affine params + bf16 input ----------------------
    w_r = jax.random.normal(k1, (in_features,), dtype=jnp.float32)
    b_r = jax.random.normal(k2, (in_features,), dtype=jnp.float32)
    x_bf = x.astype(jnp.bfloat16)
    out = jax.block_until_ready(layer_norm_pallas(x_bf, w_r, b_r, eps=eps, mean=True))
    ref = layer_norm_ref(x_bf, w_r, b_r, eps=eps, mean=True)
    np.testing.assert_allclose(np.asarray(out, dtype=np.float32),
                               np.asarray(ref, dtype=np.float32),
                               rtol=2e-2, atol=2e-2)

    # --- case 4: multi-dim input, feature size not a multiple of 128 --------
    # stats over all dims except samples; F = 4*24 = 96 (no pad / slice passes)
    x3 = jax.random.normal(k3, (8, 4, 24), dtype=jnp.float32)
    w3 = jnp.ones((24,), dtype=jnp.float32)
    b3 = jnp.zeros((24,), dtype=jnp.float32)
    out = jax.block_until_ready(layer_norm_pallas(x3, w3, b3, eps=eps, mean=True))
    ref = layer_norm_ref(x3, w3, b3, eps=eps, mean=True)
    np.testing.assert_allclose(np.asarray(out), np.asarray(ref), rtol=1e-5, atol=1e-5)

    print("KERNEL_OK")
</pallas_src>

<mosaic_0001>
module attributes {stable_mosaic.version = 11 : i64} {
  func.func @_layer_norm_kernel(%arg0: i32, %arg1: memref<64x128xf32, #tpu.memory_space<vmem>>, %arg2: memref<1x128xf32, #tpu.memory_space<vmem>>, %arg3: memref<1x128xf32, #tpu.memory_space<vmem>>, %arg4: memref<64x128xf32, #tpu.memory_space<vmem>>) attributes {dimension_semantics = [#tpu.dimension_semantics<parallel>], iteration_bounds = array<i64: 1>, scalar_prefetch = 0 : i64, scratch_operands = 0 : i64, tpu.core_type = #tpu.core_type<tc>, window_params = [{transform_indices = @transform_0, window_bounds = array<i64: 64, 128>}, {pipeline_mode = #tpu.pipeline_mode<synchronous>, transform_indices = @transform_1, window_bounds = array<i64: 1, 128>}, {pipeline_mode = #tpu.pipeline_mode<synchronous>, transform_indices = @transform_2, window_bounds = array<i64: 1, 128>}, {transform_indices = @transform_3, window_bounds = array<i64: 64, 128>}]} {
    %c0 = arith.constant 0 : index
    %c0_0 = arith.constant 0 : index
    %0 = vector.load %arg1[%c0, %c0_0] : memref<64x128xf32, #tpu.memory_space<vmem>>, vector<64x128xf32>
    %cst = arith.constant dense<0.000000e+00> : vector<64xf32>
    %1 = vector.multi_reduction <add>, %0, %cst [1] : vector<64x128xf32> to vector<64xf32>
    %2 = vector.shape_cast %1 : vector<64xf32> to vector<64x1xf32>
    %cst_1 = arith.constant 7.812500e-03 : f32
    %3 = vector.broadcast %cst_1 : f32 to vector<64x1xf32>
    %4 = arith.mulf %2, %3 : vector<64x1xf32>
    %5 = vector.broadcast %4 : vector<64x1xf32> to vector<64x128xf32>
    %6 = arith.subf %0, %5 : vector<64x128xf32>
    %7 = arith.mulf %6, %6 : vector<64x128xf32>
    %cst_2 = arith.constant dense<0.000000e+00> : vector<64xf32>
    %8 = vector.multi_reduction <add>, %7, %cst_2 [1] : vector<64x128xf32> to vector<64xf32>
    %9 = vector.shape_cast %8 : vector<64xf32> to vector<64x1xf32>
    %cst_3 = arith.constant 7.812500e-03 : f32
    %10 = vector.broadcast %cst_3 : f32 to vector<64x1xf32>
    %11 = arith.mulf %9, %10 : vector<64x1xf32>
    %cst_4 = arith.constant 9.99999974E-6 : f32
    %12 = vector.broadcast %cst_4 : f32 to vector<64x1xf32>
    %13 = arith.addf %11, %12 : vector<64x1xf32>
    %14 = math.rsqrt %13 : vector<64x1xf32>
    %15 = vector.broadcast %14 : vector<64x1xf32> to vector<64x128xf32>
    %16 = arith.mulf %6, %15 : vector<64x128xf32>
    %c0_5 = arith.constant 0 : index
    %c0_6 = arith.constant 0 : index
    %17 = vector.load %arg2[%c0_5, %c0_6] : memref<1x128xf32, #tpu.memory_space<vmem>>, vector<1x128xf32>
    %18 = vector.broadcast %17 : vector<1x128xf32> to vector<64x128xf32>
    %19 = arith.mulf %16, %18 : vector<64x128xf32>
    %c0_7 = arith.constant 0 : index
    %c0_8 = arith.constant 0 : index
    %20 = vector.load %arg3[%c0_7, %c0_8] : memref<1x128xf32, #tpu.memory_space<vmem>>, vector<1x128xf32>
    %21 = vector.broadcast %20 : vector<1x128xf32> to vector<64x128xf32>
    %22 = arith.addf %19, %21 : vector<64x128xf32>
    %c0_9 = arith.constant 0 : index
    %c0_10 = arith.constant 0 : index
    %23 = vector.load %arg4[%c0_9, %c0_10] : memref<64x128xf32, #tpu.memory_space<vmem>>, vector<64x128xf32>
    tpu.vector_store %arg4[%c0_9, %c0_10], %22 {strides = array<i32>} : memref<64x128xf32, #tpu.memory_space<vmem>>, vector<64x128xf32>,
    return
  }
  func.func @transform_0(%arg0: i32) -> (i32, i32) {
    %c0_i32 = arith.constant 0 : i32
    %c0_i32_0 = arith.constant 0 : i32
    return %arg0, %c0_i32 : i32, i32
  }
  func.func @transform_1(%arg0: i32) -> (i32, i32) {
    %c0_i32 = arith.constant 0 : i32
    %c0_i32_0 = arith.constant 0 : i32
    %c0_i32_1 = arith.constant 0 : i32
    return %c0_i32, %c0_i32_0 : i32, i32
  }
  func.func @transform_2(%arg0: i32) -> (i32, i32) {
    %c0_i32 = arith.constant 0 : i32
    %c0_i32_0 = arith.constant 0 : i32
    %c0_i32_1 = arith.constant 0 : i32
    return %c0_i32, %c0_i32_0 : i32, i32
  }
  func.func @transform_3(%arg0: i32) -> (i32, i32) {
    %c0_i32 = arith.constant 0 : i32
    %c0_i32_0 = arith.constant 0 : i32
    return %arg0, %c0_i32 : i32, i32
  }
}

</mosaic_0001>

<llo_original>
// kernel: tpu_custom_call.1
$region0: #{tpu_custom_call.1}
  #allocation0 [shape = 'u32[]', space=smem, size = 0x4, offset = 0x4, fixed_abs, tag = 'smem constant byte address 0x4 - core index']
  #allocation1 [shape = 'u32[144,128]{1,0:T(1,128)}', space=vmem, size = 0x12000, scoped, tag = 'internal scratch']
  %s0 = inlined_call_operand.hbm [shape: f32[64,128], index: 0, kind: input, shape index: {}]
  %s1 = inlined_call_operand.vmem [shape: f32[1,128], index: 1, kind: input, shape index: {}]
  %s2 = inlined_call_operand.vmem [shape: f32[1,128], index: 2, kind: input, shape index: {}]
  %s3 = inlined_call_operand.hbm [shape: f32[64,128], index: 3, kind: output, shape index: {}]
  %s4 = sld [smem:[#allocation0]]
  $region26: #{tpu_custom_call.1} parent=0
    _
  %s6 = ssub.s32 1, %s4
  %s7 = scalar_select 0, %s6, %s4
  $region1: #{tpu_custom_call.1} parent=0
    #allocation2 [shape = 'u8[32768]{0}', space=vmem, size = 0x8000, scoped, tag = 'input window, operand 0, single buffered']
    #allocation3 [shape = 's32[1]{0}', space=sflag, size = 0x4, scoped, tag = 'scoped memory for tpu_custom_call.1']
    #allocation4 [shape = 's32[1]{0}', space=sflag, size = 0x4, scoped, tag = 'scoped memory for tpu_custom_call.1']
    #allocation5 [shape = 'u8[32768]{0}', space=vmem, size = 0x8000, scoped, tag = 'output window, operand 0, single buffered']
    %8 = vsyncpa [#allocation3], 0
    %9 = vsyncpa [#allocation4], 0
    // Predicated region
    $region2: #{tpu_custom_call.1} parent=1 // pred_check
      _
    $region3: #{tpu_custom_call.1} parent=1 // pred_check_branch
      %11 = sbr.rel (0) target = $region5
    $region4: #{tpu_custom_call.1} parent=1 // pred_region
      %s13 = ssub.s32 1024, 1024
      %14 = vsyncadd [#allocation3], %s13
      %s15 = sshll.u32 [#allocation2], 4
      %s16 = int_to_ptr.vmem [resolvable:$true] %s15
      %21 = dma.hbm_to_vmem [thread:$0]  %s0, 1024, %s16, [#allocation3], 128, 128, 8
    $region5: #{tpu_custom_call.1} parent=1 // pred_fallthru
      _
    // Predicated region
    $region6: #{tpu_custom_call.1} parent=1 // pred_check
      _
    $region7: #{tpu_custom_call.1} parent=1 // pred_check_branch
      %23 = sbr.rel (0) target = $region9
    $region8: #{tpu_custom_call.1} parent=1 // pred_region
      _
    $region9: #{tpu_custom_call.1} parent=1 // pred_fallthru
      _
    // Predicated region
    $region10: #{tpu_custom_call.1} parent=1 // pred_check
      _
    $region11: #{tpu_custom_call.1} parent=1 // pred_check_branch
      %25 = sbr.rel (0) target = $region13
    $region12: #{tpu_custom_call.1} parent=1 // pred_region
      _
    $region13: #{tpu_custom_call.1} parent=1 // pred_fallthru
      _
    // Predicated region
    $region14: #{tpu_custom_call.1} parent=1 // pred_check
      _
    $region15: #{tpu_custom_call.1} parent=1 // pred_check_branch
      %27 = sbr.rel (0) target = $region17
    $region16: #{tpu_custom_call.1} parent=1 // pred_region
      %28 = dma.done [#allocation3], 1024
    $region17: #{tpu_custom_call.1} parent=1 // pred_fallthru
      _
    %v29 = vld [vmem:[#allocation2] sm:$0xff]
    %v30 = vld [vmem:[#allocation2 + $0x8] sm:$0xff]
    %v31 = vld [vmem:[#allocation2 + $0x10] sm:$0xff]
    %v32 = vld [vmem:[#allocation2 + $0x18] sm:$0xff]
    %v33 = vld [vmem:[#allocation2 + $0x20] sm:$0xff]
    %v34 = vld [vmem:[#allocation2 + $0x28] sm:$0xff]
    %v35 = vld [vmem:[#allocation2 + $0x30] sm:$0xff]
    %v36 = vld [vmem:[#allocation2 + $0x38] sm:$0xff]
    %37 = vadd.xlane.f32.xlu0 %v29
    %v38 = vpop.xlane.xlu0 %37
    %39 = vadd.xlane.f32.xlu0 %v30
    %v40 = vpop.xlane.xlu0 %39
    %41 = vadd.xlane.f32.xlu0 %v31
    %v42 = vpop.xlane.xlu0 %41
    %43 = vadd.xlane.f32.xlu0 %v32
    %v44 = vpop.xlane.xlu0 %43
    %45 = vadd.xlane.f32.xlu0 %v33
    %v46 = vpop.xlane.xlu0 %45
    %47 = vadd.xlane.f32.xlu0 %v34
    %v48 = vpop.xlane.xlu0 %47
    %49 = vadd.xlane.f32.xlu0 %v35
    %v50 = vpop.xlane.xlu0 %49
    %51 = vadd.xlane.f32.xlu0 %v36
    %v52 = vpop.xlane.xlu0 %51
    %v53 = vmul.f32 %v38, 0.0078125
    %v54 = vmul.f32 %v40, 0.0078125
    %v55 = vmul.f32 %v42, 0.0078125
    %v56 = vmul.f32 %v44, 0.0078125
    %v57 = vmul.f32 %v46, 0.0078125
    %v58 = vmul.f32 %v48, 0.0078125
    %v59 = vmul.f32 %v50, 0.0078125
    %v60 = vmul.f32 %v52, 0.0078125
    %v61 = vsub.f32 %v29, %v53
    %v62 = vsub.f32 %v30, %v54
    %v63 = vsub.f32 %v31, %v55
    %v64 = vsub.f32 %v32, %v56
    %v65 = vsub.f32 %v33, %v57
    %v66 = vsub.f32 %v34, %v58
    %v67 = vsub.f32 %v35, %v59
    %v68 = vsub.f32 %v36, %v60
    %v69 = vmul.f32 %v61, %v61
    %v70 = vmul.f32 %v62, %v62
    %v71 = vmul.f32 %v63, %v63
    %v72 = vmul.f32 %v64, %v64
    %v73 = vmul.f32 %v65, %v65
    %v74 = vmul.f32 %v66, %v66
    %v75 = vmul.f32 %v67, %v67
    %v76 = vmul.f32 %v68, %v68
    %77 = vadd.xlane.f32.xlu0 %v69
    %v78 = vpop.xlane.xlu0 %77
    %79 = vadd.xlane.f32.xlu0 %v70
    %v80 = vpop.xlane.xlu0 %79
    %81 = vadd.xlane.f32.xlu0 %v71
    %v82 = vpop.xlane.xlu0 %81
    %83 = vadd.xlane.f32.xlu0 %v72
    %v84 = vpop.xlane.xlu0 %83
    %85 = vadd.xlane.f32.xlu0 %v73
    %v86 = vpop.xlane.xlu0 %85
    %87 = vadd.xlane.f32.xlu0 %v74
    %v88 = vpop.xlane.xlu0 %87
    %89 = vadd.xlane.f32.xlu0 %v75
    %v90 = vpop.xlane.xlu0 %89
    %91 = vadd.xlane.f32.xlu0 %v76
    %v92 = vpop.xlane.xlu0 %91
    %v93 = vmul.f32 %v78, 0.0078125
    %v94 = vmul.f32 %v80, 0.0078125
    %v95 = vmul.f32 %v82, 0.0078125
    %v96 = vmul.f32 %v84, 0.0078125
    %v97 = vmul.f32 %v86, 0.0078125
    %v98 = vmul.f32 %v88, 0.0078125
    %v99 = vmul.f32 %v90, 0.0078125
    %v100 = vmul.f32 %v92, 0.0078125
    %v101 = vadd.f32 %v93, 1e-05
    %v102 = vadd.f32 %v94, 1e-05
    %v103 = vadd.f32 %v95, 1e-05
    %v104 = vadd.f32 %v96, 1e-05
    %v105 = vadd.f32 %v97, 1e-05
    %v106 = vadd.f32 %v98, 1e-05
    %v107 = vadd.f32 %v99, 1e-05
    %v108 = vadd.f32 %v100, 1e-05
    %v109 = vrsqrt.pop %v101
    %v110 = vrsqrt.pop %v102
    %v111 = vrsqrt.pop %v103
    %v112 = vrsqrt.pop %v104
    %v113 = vrsqrt.pop %v105
    %v114 = vrsqrt.pop %v106
    %v115 = vrsqrt.pop %v107
    %v116 = vrsqrt.pop %v108
    %v117 = vmul.f32 %v61, %v109
    %v118 = vmul.f32 %v62, %v110
    %v119 = vmul.f32 %v63, %v111
    %v120 = vmul.f32 %v64, %v112
    %v121 = vmul.f32 %v65, %v113
    %v122 = vmul.f32 %v66, %v114
    %v123 = vmul.f32 %v67, %v115
    %v124 = vmul.f32 %v68, %v116
    %v125 = vld [vmem:[%s1] sm:$0x1]
    %v127 = vlaneseq
    %v128 = vshrl.u32 %v127, 7
    %v129 = vsub.s32 0, %v128
    %v130 = vrot.slane %v125, %v129
    %v132 = vmul.f32 %v117, %v130
    %v133 = vmul.f32 %v118, %v130
    %v134 = vmul.f32 %v119, %v130
    %v135 = vmul.f32 %v120, %v130
    %v136 = vmul.f32 %v121, %v130
    %v137 = vmul.f32 %v122, %v130
    %v138 = vmul.f32 %v123, %v130
    %v139 = vmul.f32 %v124, %v130
    %v140 = vld [vmem:[%s2] sm:$0x1]
    %v142 = vlaneseq
    %v143 = vshrl.u32 %v142, 7
    %v144 = vsub.s32 0, %v143
    %v145 = vrot.slane %v140, %v144
    %v147 = vadd.f32 %v132, %v145
    %v148 = vadd.f32 %v133, %v145
    %v149 = vadd.f32 %v134, %v145
    %v150 = vadd.f32 %v135, %v145
    %v151 = vadd.f32 %v136, %v145
    %v152 = vadd.f32 %v137, %v145
    %v153 = vadd.f32 %v138, %v145
    %v154 = vadd.f32 %v139, %v145
    %155 = vst [vmem:[#allocation5] sm:$0xff] %v147
    %156 = vst [vmem:[#allocation5 + $0x8] sm:$0xff] %v148
    %157 = vst [vmem:[#allocation5 + $0x10] sm:$0xff] %v149
    %158 = vst [vmem:[#allocation5 + $0x18] sm:$0xff] %v150
    %159 = vst [vmem:[#allocation5 + $0x20] sm:$0xff] %v151
    %160 = vst [vmem:[#allocation5 + $0x28] sm:$0xff] %v152
    %161 = vst [vmem:[#allocation5 + $0x30] sm:$0xff] %v153
    %162 = vst [vmem:[#allocation5 + $0x38] sm:$0xff] %v154
    // Predicated region
    $region18: #{tpu_custom_call.1} parent=1 // pred_check
      _
    $region19: #{tpu_custom_call.1} parent=1 // pred_check_branch
      %164 = sbr.rel (0) target = $region21
    $region20: #{tpu_custom_call.1} parent=1 // pred_region
      %s166 = ssub.s32 1024, 1024
      %167 = vsyncadd [#allocation4], %s166
      %s168 = sshll.u32 [#allocation5], 4
      %s169 = int_to_ptr.vmem [resolvable:$true] %s168
      %174 = dma.vmem_to_hbm [thread:$0]  %s169, 1024, %s3, [#allocation4], 128, 128, 8
    $region21: #{tpu_custom_call.1} parent=1 // pred_fallthru
      _
    // Predicated region
    $region22: #{tpu_custom_call.1} parent=1 // pred_check
      _
    $region23: #{tpu_custom_call.1} parent=1 // pred_check_branch
      %176 = sbr.rel (0) target = $region25
    $region24: #{tpu_custom_call.1} parent=1 // pred_region
      %177 = dma.done [#allocation4], 1024
    $region25: #{tpu_custom_call.1} parent=1 // pred_fallthru
      _
    %178 = vsyncpa [#allocation3], 1
    %179 = vsyncpa [#allocation4], 1

</llo_original>
